<compile_context>
chip_gen: v5e
topology: v5e:2x2
jax: 0.10.0
libtpu: 0.0.40
codegen_flags: <defaults>
</compile_context>

<pallas_src>
import jax
import jax.numpy as jnp
from jax.experimental import pallas as pl
from jax.experimental.pallas import tpu as pltpu

K_IN = 200      # input feature count (un-padded; 200 % 8 == 0, full-dim block)
H = 256         # hidden width
N_PAD = 128     # lane-dense padded classifier width (sliced back to n_domains)


def _round_up(x, m):
    return ((x + m - 1) // m) * m


def dd_mlp_kernel(x_ref, w1_ref, b1_ref, w2_ref, b2_ref, w3_ref, b3_ref, o_ref):
    # revgrad is identity on the forward path -> no-op here.
    # Cast activations to bf16 right before each MXU matmul; accumulate in f32,
    # keep bias-add + ReLU in f32 on the VPU.
    x = x_ref[...].astype(jnp.bfloat16)

    h1 = jnp.dot(x, w1_ref[...], preferred_element_type=jnp.float32)
    h1 = jnp.maximum(h1 + b1_ref[...], 0.0)

    h2 = jnp.dot(h1.astype(jnp.bfloat16), w2_ref[...],
                 preferred_element_type=jnp.float32)
    h2 = jnp.maximum(h2 + b2_ref[...], 0.0)

    out = jnp.dot(h2.astype(jnp.bfloat16), w3_ref[...],
                  preferred_element_type=jnp.float32)
    o_ref[...] = (out + b3_ref[...]).astype(o_ref.dtype)


def dd_forward(x, params, n_domains, *, tm=512):
    """x: [B, 200] float32. Returns [B, n_domains] float32 logits."""
    w1, b1, w2, b2, w3, b3 = (
        params["w1"], params["b1"], params["w2"],
        params["b2"], params["w3"], params["b3"],
    )
    B = x.shape[0]
    x = x.astype(jnp.float32)

    # Batch tile: multiple of 8 (sublane-aligned), capped at `tm`. No batch padding:
    # the last (ragged) tile's OOB rows are masked on the output store.
    tm_eff = min(tm, _round_up(B, 8))
    # v7x has two TensorCores: if the batch is big enough, keep >= 2 parallel grid
    # steps so the "parallel" batch axis can shard across both cores.
    if pl.cdiv(B, tm_eff) == 1 and B >= 512:
        tm_eff = _round_up(pl.cdiv(B, 2), 8)
    grid = (pl.cdiv(B, tm_eff),)

    flops = 2 * B * (K_IN * H + H * H + H * N_PAD)
    weight_bytes = sum(
        int(p.size) * p.dtype.itemsize for p in (w1, w2, w3, b1, b2, b3)
    )
    bytes_accessed = 4 * (x.size + B * N_PAD) + weight_bytes
    cost = pl.CostEstimate(
        flops=flops, transcendentals=0, bytes_accessed=int(bytes_accessed)
    )

    # Explicit scoped-VMEM limit (v5e defaults to 16 MiB; v7x physical is 64 MiB).
    act_bytes = tm_eff * (K_IN + N_PAD) * 4            # x tile + out tile (f32)
    scratch_bytes = 6 * tm_eff * H * 4                 # h1/h2/bf16 temporaries slack
    vmem_needed = 2 * act_bytes + 2 * weight_bytes + scratch_bytes
    vmem_limit = int(min(64 * 1024 * 1024, max(32 * 1024 * 1024, 2 * vmem_needed)))

    out = pl.pallas_call(
        dd_mlp_kernel,
        out_shape=jax.ShapeDtypeStruct((B, N_PAD), jnp.float32),
        grid=grid,
        in_specs=[
            pl.BlockSpec((tm_eff, K_IN), lambda i: (i, 0)),   # x tile (pipelined)
            pl.BlockSpec((K_IN, H), lambda i: (0, 0)),        # w1 bf16 (resident)
            pl.BlockSpec((1, H), lambda i: (0, 0)),           # b1 f32
            pl.BlockSpec((H, H), lambda i: (0, 0)),           # w2 bf16
            pl.BlockSpec((1, H), lambda i: (0, 0)),           # b2 f32
            pl.BlockSpec((H, N_PAD), lambda i: (0, 0)),       # w3 bf16 (padded N)
            pl.BlockSpec((1, N_PAD), lambda i: (0, 0)),       # b3 f32 (padded N)
        ],
        out_specs=pl.BlockSpec((tm_eff, N_PAD), lambda i: (i, 0)),
        compiler_params=pltpu.CompilerParams(
            dimension_semantics=("parallel",),
            vmem_limit_bytes=vmem_limit,
        ),
        cost_estimate=cost,
    )(x, w1, b1, w2, b2, w3, b3)

    return out[:, :n_domains]


def init_params(key, n_domains):
    """PyTorch nn.Linear-equivalent init. Weights stored pre-transposed [in, out] in
    bf16 (halves weight HBM traffic, native MXU bf16 path); biases stay f32 [1, out].
    The classifier's weight/bias are zero-padded to N_PAD lanes (exact math)."""
    def linear(key, fan_in, fan_out, pad_out):
        kw, kb = jax.random.split(key)
        bound = 1.0 / (fan_in ** 0.5)
        w = jax.random.uniform(kw, (fan_in, fan_out), jnp.float32, -bound, bound)
        b = jax.random.uniform(kb, (1, fan_out), jnp.float32, -bound, bound)
        w = jnp.pad(w, ((0, 0), (0, pad_out - fan_out))).astype(jnp.bfloat16)
        b = jnp.pad(b, ((0, 0), (0, pad_out - fan_out)))
        return w, b

    k1, k2, k3 = jax.random.split(key, 3)
    w1, b1 = linear(k1, K_IN, H, H)              # [200, 256] bf16, [1, 256] f32
    w2, b2 = linear(k2, H, H, H)                 # [256, 256] bf16, [1, 256] f32
    w3, b3 = linear(k3, H, n_domains, N_PAD)     # [256, 128] bf16, [1, 128] f32
    return {"w1": w1, "b1": b1, "w2": w2, "b2": b2, "w3": w3, "b3": b3}


def reference_forward(x, params, n_domains, matmul_dtype):
    """Pure-JAX reference. matmul_dtype=bf16 mirrors the kernel's cast points;
    matmul_dtype=f32 checks the module's semantics (activation rounding only)."""
    w1 = params["w1"].astype(matmul_dtype)
    w2 = params["w2"].astype(matmul_dtype)
    w3 = params["w3"][:, :n_domains].astype(matmul_dtype)
    b1, b2, b3 = params["b1"], params["b2"], params["b3"][:, :n_domains]
    h = jnp.dot(x.astype(matmul_dtype), w1, preferred_element_type=jnp.float32) + b1
    h = jnp.maximum(h, 0.0)
    h = jnp.dot(h.astype(matmul_dtype), w2, preferred_element_type=jnp.float32) + b2
    h = jnp.maximum(h, 0.0)
    return jnp.dot(h.astype(matmul_dtype), w3, preferred_element_type=jnp.float32) + b3


if __name__ == "__main__":
    n_domains = 10

    key = jax.random.PRNGKey(0)
    k_params, k_x1, k_x2 = jax.random.split(key, 3)
    params = init_params(k_params, n_domains)

    # Small batch: single tile, unchanged from the module's typical use.
    x_small = jax.random.normal(k_x1, (8, K_IN), dtype=jnp.float32)
    out_small = jax.block_until_ready(dd_forward(x_small, params, n_domains))
    assert out_small.shape == (8, n_domains)

    # Larger batch with a ragged last tile: grid = cdiv(300, 128) = 3 (exercises the
    # no-batch-pad path and multi-step pipeline).
    x_big = jax.random.normal(k_x2, (300, K_IN), dtype=jnp.float32)
    out_big = jax.block_until_ready(dd_forward(x_big, params, n_domains, tm=128))
    assert out_big.shape == (300, n_domains)

    for x_t, out_t in ((x_small, out_small), (x_big, out_big)):
        # Tight check against a reference with matching bf16 cast points.
        ref_bf16 = reference_forward(x_t, params, n_domains, jnp.bfloat16)
        assert jnp.allclose(out_t, ref_bf16, atol=1e-4, rtol=1e-4), float(
            jnp.max(jnp.abs(out_t - ref_bf16))
        )
        # Loose check against full-f32 activation math (bf16 rounding tolerance).
        ref_f32 = reference_forward(x_t, params, n_domains, jnp.float32)
        assert jnp.allclose(out_t, ref_f32, atol=1e-1, rtol=1e-1), float(
            jnp.max(jnp.abs(out_t - ref_f32))
        )

    print("KERNEL_OK")
</pallas_src>

<mosaic_0001>
module attributes {stable_mosaic.version = 11 : i64} {
  func.func @dd_mlp_kernel(%arg0: i32, %arg1: memref<8x200xf32, #tpu.memory_space<vmem>>, %arg2: memref<200x256xbf16, #tpu.memory_space<vmem>>, %arg3: memref<1x256xf32, #tpu.memory_space<vmem>>, %arg4: memref<256x256xbf16, #tpu.memory_space<vmem>>, %arg5: memref<1x256xf32, #tpu.memory_space<vmem>>, %arg6: memref<256x128xbf16, #tpu.memory_space<vmem>>, %arg7: memref<1x128xf32, #tpu.memory_space<vmem>>, %arg8: memref<8x128xf32, #tpu.memory_space<vmem>>) attributes {dimension_semantics = [#tpu.dimension_semantics<parallel>], iteration_bounds = array<i64: 1>, scalar_prefetch = 0 : i64, scratch_operands = 0 : i64, tpu.core_type = #tpu.core_type<tc>, window_params = [{transform_indices = @transform_0, window_bounds = array<i64: 8, 200>}, {pipeline_mode = #tpu.pipeline_mode<synchronous>, transform_indices = @transform_1, window_bounds = array<i64: 200, 256>}, {pipeline_mode = #tpu.pipeline_mode<synchronous>, transform_indices = @transform_2, window_bounds = array<i64: 1, 256>}, {pipeline_mode = #tpu.pipeline_mode<synchronous>, transform_indices = @transform_3, window_bounds = array<i64: 256, 256>}, {pipeline_mode = #tpu.pipeline_mode<synchronous>, transform_indices = @transform_4, window_bounds = array<i64: 1, 256>}, {pipeline_mode = #tpu.pipeline_mode<synchronous>, transform_indices = @transform_5, window_bounds = array<i64: 256, 128>}, {pipeline_mode = #tpu.pipeline_mode<synchronous>, transform_indices = @transform_6, window_bounds = array<i64: 1, 128>}, {transform_indices = @transform_7, window_bounds = array<i64: 8, 128>}]} {
    %c0 = arith.constant 0 : index
    %c0_0 = arith.constant 0 : index
    %0 = vector.load %arg1[%c0, %c0_0] : memref<8x200xf32, #tpu.memory_space<vmem>>, vector<8x200xf32>
    %1 = arith.truncf %0 : vector<8x200xf32> to vector<8x200xbf16>
    %c0_1 = arith.constant 0 : index
    %c0_2 = arith.constant 0 : index
    %2 = vector.load %arg2[%c0_1, %c0_2] : memref<200x256xbf16, #tpu.memory_space<vmem>>, vector<200x256xbf16>
    %cst = arith.constant dense<0.000000e+00> : vector<8x256xf32>
    %3 = tpu.matmul %1, %2, %cst {dimension_numbers = #tpu.dot_dimension_numbers<[1], [0], [0], [1], [0, 0, 1, 1], [], []>} : vector<8x200xbf16>, vector<200x256xbf16>, vector<8x256xf32> -> vector<8x256xf32>
    %c0_3 = arith.constant 0 : index
    %c0_4 = arith.constant 0 : index
    %4 = vector.load %arg3[%c0_3, %c0_4] : memref<1x256xf32, #tpu.memory_space<vmem>>, vector<1x256xf32>
    %5 = vector.broadcast %4 : vector<1x256xf32> to vector<8x256xf32>
    %6 = arith.addf %3, %5 : vector<8x256xf32>
    %cst_5 = arith.constant 0.000000e+00 : f32
    %7 = vector.broadcast %cst_5 : f32 to vector<8x256xf32>
    %8 = arith.maximumf %6, %7 : vector<8x256xf32>
    %9 = arith.truncf %8 : vector<8x256xf32> to vector<8x256xbf16>
    %c0_6 = arith.constant 0 : index
    %c0_7 = arith.constant 0 : index
    %10 = vector.load %arg4[%c0_6, %c0_7] : memref<256x256xbf16, #tpu.memory_space<vmem>>, vector<256x256xbf16>
    %cst_8 = arith.constant dense<0.000000e+00> : vector<8x256xf32>
    %11 = tpu.matmul %9, %10, %cst_8 {dimension_numbers = #tpu.dot_dimension_numbers<[1], [0], [0], [1], [0, 0, 1, 1], [], []>} : vector<8x256xbf16>, vector<256x256xbf16>, vector<8x256xf32> -> vector<8x256xf32>
    %c0_9 = arith.constant 0 : index
    %c0_10 = arith.constant 0 : index
    %12 = vector.load %arg5[%c0_9, %c0_10] : memref<1x256xf32, #tpu.memory_space<vmem>>, vector<1x256xf32>
    %13 = vector.broadcast %12 : vector<1x256xf32> to vector<8x256xf32>
    %14 = arith.addf %11, %13 : vector<8x256xf32>
    %cst_11 = arith.constant 0.000000e+00 : f32
    %15 = vector.broadcast %cst_11 : f32 to vector<8x256xf32>
    %16 = arith.maximumf %14, %15 : vector<8x256xf32>
    %17 = arith.truncf %16 : vector<8x256xf32> to vector<8x256xbf16>
    %c0_12 = arith.constant 0 : index
    %c0_13 = arith.constant 0 : index
    %18 = vector.load %arg6[%c0_12, %c0_13] : memref<256x128xbf16, #tpu.memory_space<vmem>>, vector<256x128xbf16>
    %cst_14 = arith.constant dense<0.000000e+00> : vector<8x128xf32>
    %19 = tpu.matmul %17, %18, %cst_14 {dimension_numbers = #tpu.dot_dimension_numbers<[1], [0], [0], [1], [0, 0, 1, 1], [], []>} : vector<8x256xbf16>, vector<256x128xbf16>, vector<8x128xf32> -> vector<8x128xf32>
    %c0_15 = arith.constant 0 : index
    %c0_16 = arith.constant 0 : index
    %20 = vector.load %arg7[%c0_15, %c0_16] : memref<1x128xf32, #tpu.memory_space<vmem>>, vector<1x128xf32>
    %21 = vector.broadcast %20 : vector<1x128xf32> to vector<8x128xf32>
    %22 = arith.addf %19, %21 : vector<8x128xf32>
    %c0_17 = arith.constant 0 : index
    %c0_18 = arith.constant 0 : index
    %23 = vector.load %arg8[%c0_17, %c0_18] : memref<8x128xf32, #tpu.memory_space<vmem>>, vector<8x128xf32>
    tpu.vector_store %arg8[%c0_17, %c0_18], %22 {strides = array<i32>} : memref<8x128xf32, #tpu.memory_space<vmem>>, vector<8x128xf32>,
    return
  }
  func.func @transform_0(%arg0: i32) -> (i32, i32) {
    %c0_i32 = arith.constant 0 : i32
    %c0_i32_0 = arith.constant 0 : i32
    return %arg0, %c0_i32 : i32, i32
  }
  func.func @transform_1(%arg0: i32) -> (i32, i32) {
    %c0_i32 = arith.constant 0 : i32
    %c0_i32_0 = arith.constant 0 : i32
    %c0_i32_1 = arith.constant 0 : i32
    return %c0_i32, %c0_i32_0 : i32, i32
  }
  func.func @transform_2(%arg0: i32) -> (i32, i32) {
    %c0_i32 = arith.constant 0 : i32
    %c0_i32_0 = arith.constant 0 : i32
    %c0_i32_1 = arith.constant 0 : i32
    return %c0_i32, %c0_i32_0 : i32, i32
  }
  func.func @transform_3(%arg0: i32) -> (i32, i32) {
    %c0_i32 = arith.constant 0 : i32
    %c0_i32_0 = arith.constant 0 : i32
    %c0_i32_1 = arith.constant 0 : i32
    return %c0_i32, %c0_i32_0 : i32, i32
  }
  func.func @transform_4(%arg0: i32) -> (i32, i32) {
    %c0_i32 = arith.constant 0 : i32
    %c0_i32_0 = arith.constant 0 : i32
    %c0_i32_1 = arith.constant 0 : i32
    return %c0_i32, %c0_i32_0 : i32, i32
  }
  func.func @transform_5(%arg0: i32) -> (i32, i32) {
    %c0_i32 = arith.constant 0 : i32
    %c0_i32_0 = arith.constant 0 : i32
    %c0_i32_1 = arith.constant 0 : i32
    return %c0_i32, %c0_i32_0 : i32, i32
  }
  func.func @transform_6(%arg0: i32) -> (i32, i32) {
    %c0_i32 = arith.constant 0 : i32
    %c0_i32_0 = arith.constant 0 : i32
    %c0_i32_1 = arith.constant 0 : i32
    return %c0_i32, %c0_i32_0 : i32, i32
  }
  func.func @transform_7(%arg0: i32) -> (i32, i32) {
    %c0_i32 = arith.constant 0 : i32
    %c0_i32_0 = arith.constant 0 : i32
    return %arg0, %c0_i32 : i32, i32
  }
}

</mosaic_0001>

<llo_original>
// kernel: tpu_custom_call.1
$region0: #{tpu_custom_call.1}
  #allocation0 [shape = 'u32[]', space=smem, size = 0x4, offset = 0x4, fixed_abs, tag = 'smem constant byte address 0x4 - core index']
  #allocation1 [shape = 'u32[72,128]{1,0:T(1,128)}', space=vmem, size = 0x9000, scoped, tag = 'internal scratch']
  %s0 = inlined_call_operand.hbm [shape: f32[8,200], index: 0, kind: input, shape index: {}]
  %s1 = inlined_call_operand.hbm [shape: bf16[200,256], index: 1, kind: input, shape index: {}]
  %s2 = inlined_call_operand.hbm [shape: f32[1,256], index: 2, kind: input, shape index: {}]
  %s3 = inlined_call_operand.hbm [shape: bf16[256,256], index: 3, kind: input, shape index: {}]
  %s4 = inlined_call_operand.vmem [shape: f32[1,256], index: 4, kind: input, shape index: {}]
  %s5 = inlined_call_operand.hbm [shape: bf16[256,128], index: 5, kind: input, shape index: {}]
  %s6 = inlined_call_operand.vmem [shape: f32[1,128], index: 6, kind: input, shape index: {}]
  %s7 = inlined_call_operand.hbm [shape: f32[8,128], index: 7, kind: output, shape index: {}]
  %s8 = sld [smem:[#allocation0]]
  $region58: #{tpu_custom_call.1} parent=0
    _
  %s10 = ssub.s32 1, %s8
  %s11 = scalar_select 0, %s10, %s8
  $region1: #{tpu_custom_call.1} parent=0
    #allocation2 [shape = 'u8[8192]{0}', space=vmem, size = 0x2000, scoped, tag = 'input window, operand 0, single buffered']
    #allocation3 [shape = 's32[1]{0}', space=sflag, size = 0x4, scoped, tag = 'scoped memory for tpu_custom_call.1']
    #allocation4 [shape = 's32[1]{0}', space=sflag, size = 0x4, scoped, tag = 'scoped memory for tpu_custom_call.1']
    #allocation5 [shape = 'u8[102400]{0}', space=vmem, size = 0x19000, scoped, tag = 'input window, operand 1, single buffered']
    #allocation6 [shape = 's32[1]{0}', space=sflag, size = 0x4, scoped, tag = 'scoped memory for tpu_custom_call.1']
    #allocation7 [shape = 'u8[1024]{0}', space=vmem, size = 0x400, scoped, tag = 'input window, operand 2, single buffered']
    #allocation8 [shape = 'u8[131072]{0}', space=vmem, size = 0x20000, scoped, tag = 'input window, operand 3, single buffered']
    #allocation9 [shape = 's32[1]{0}', space=sflag, size = 0x4, scoped, tag = 'scoped memory for tpu_custom_call.1']
    #allocation10 [shape = 'u8[65536]{0}', space=vmem, size = 0x10000, scoped, tag = 'input window, operand 5, single buffered']
    #allocation11 [shape = 'u8[4096]{0}', space=vmem, size = 0x1000, scoped, tag = 'output window, operand 0, single buffered']
    %12 = vsyncpa [#allocation3], 0
    %13 = vsyncpa [#allocation6], 0
    %14 = vsyncpa [#allocation9], 0
    %15 = vsyncpa [#allocation4], 0
    // Predicated region
    $region2: #{tpu_custom_call.1} parent=1 // pred_check
      _
    $region3: #{tpu_custom_call.1} parent=1 // pred_check_branch
      %17 = sbr.rel (0) target = $region5
    $region4: #{tpu_custom_call.1} parent=1 // pred_region
      %19 = vsyncadd [#allocation3], 0
      %s21 = sshll.u32 %s0, 4
      %s22 = int_to_ptr.hbm [resolvable:$true] %s21
      %s23 = sshll.u32 [#allocation2], 4
      %s24 = int_to_ptr.vmem [resolvable:$true] %s23
      %26 = dma.hbm_to_vmem [thread:$0]  %s22, 256, %s24, [#allocation3]
    $region5: #{tpu_custom_call.1} parent=1 // pred_fallthru
      _
    // Predicated region
    $region6: #{tpu_custom_call.1} parent=1 // pred_check
      _
    $region7: #{tpu_custom_call.1} parent=1 // pred_check_branch
      %28 = sbr.rel (0) target = $region9
    $region8: #{tpu_custom_call.1} parent=1 // pred_region
      %30 = vsyncadd [#allocation6], 0
      %s31 = sshll.u32 %s1, 4
      %s32 = int_to_ptr.hbm [resolvable:$true] %s31
      %s33 = sshll.u32 [#allocation5], 4
      %s34 = int_to_ptr.vmem [resolvable:$true] %s33
      %39 = dma.hbm_to_vmem [thread:$0]  %s32, 3200, %s34, [#allocation6], 128, 128, 8
    $region9: #{tpu_custom_call.1} parent=1 // pred_fallthru
      _
    // Predicated region
    $region10: #{tpu_custom_call.1} parent=1 // pred_check
      _
    $region11: #{tpu_custom_call.1} parent=1 // pred_check_branch
      %41 = sbr.rel (0) target = $region13
    $region12: #{tpu_custom_call.1} parent=1 // pred_region
      %43 = vsyncadd [#allocation6], 0
      %s45 = sshll.u32 %s2, 4
      %s46 = int_to_ptr.hbm [resolvable:$true] %s45
      %s47 = sshll.u32 [#allocation7], 4
      %s48 = int_to_ptr.vmem [resolvable:$true] %s47
      %50 = dma.hbm_to_vmem [thread:$0]  %s46, 32, %s48, [#allocation6]
    $region13: #{tpu_custom_call.1} parent=1 // pred_fallthru
      _
    // Predicated region
    $region14: #{tpu_custom_call.1} parent=1 // pred_check
      _
    $region15: #{tpu_custom_call.1} parent=1 // pred_check_branch
      %52 = sbr.rel (0) target = $region17
    $region16: #{tpu_custom_call.1} parent=1 // pred_region
      %54 = vsyncadd [#allocation9], 0
      %s55 = sshll.u32 %s3, 4
      %s56 = int_to_ptr.hbm [resolvable:$true] %s55
      %s57 = sshll.u32 [#allocation8], 4
      %s58 = int_to_ptr.vmem [resolvable:$true] %s57
      %63 = dma.hbm_to_vmem [thread:$0]  %s56, 4096, %s58, [#allocation9], 128, 128, 8
    $region17: #{tpu_custom_call.1} parent=1 // pred_fallthru
      _
    // Predicated region
    $region18: #{tpu_custom_call.1} parent=1 // pred_check
      _
    $region19: #{tpu_custom_call.1} parent=1 // pred_check_branch
      %65 = sbr.rel (0) target = $region21
    $region20: #{tpu_custom_call.1} parent=1 // pred_region
      _
    $region21: #{tpu_custom_call.1} parent=1 // pred_fallthru
      _
    // Predicated region
    $region22: #{tpu_custom_call.1} parent=1 // pred_check
      _
    $region23: #{tpu_custom_call.1} parent=1 // pred_check_branch
      %67 = sbr.rel (0) target = $region25
    $region24: #{tpu_custom_call.1} parent=1 // pred_region
      %69 = vsyncadd [#allocation9], 0
      %s70 = sshll.u32 %s5, 4
      %s71 = int_to_ptr.hbm [resolvable:$true] %s70
      %s72 = sshll.u32 [#allocation10], 4
      %s73 = int_to_ptr.vmem [resolvable:$true] %s72
      %78 = dma.hbm_to_vmem [thread:$0]  %s71, 2048, %s73, [#allocation9], 64, 64, 4
    $region25: #{tpu_custom_call.1} parent=1 // pred_fallthru
      _
    // Predicated region
    $region26: #{tpu_custom_call.1} parent=1 // pred_check
      _
    $region27: #{tpu_custom_call.1} parent=1 // pred_check_branch
      %80 = sbr.rel (0) target = $region29
    $region28: #{tpu_custom_call.1} parent=1 // pred_region
      _
    $region29: #{tpu_custom_call.1} parent=1 // pred_fallthru
      _
    // Predicated region
    $region30: #{tpu_custom_call.1} parent=1 // pred_check
      _
    $region31: #{tpu_custom_call.1} parent=1 // pred_check_branch
      %82 = sbr.rel (0) target = $region33
    $region32: #{tpu_custom_call.1} parent=1 // pred_region
      %84 = dma.done [#allocation3], 256
    $region33: #{tpu_custom_call.1} parent=1 // pred_fallthru
      _
    // Predicated region
    $region34: #{tpu_custom_call.1} parent=1 // pred_check
      _
    $region35: #{tpu_custom_call.1} parent=1 // pred_check_branch
      %86 = sbr.rel (0) target = $region37
    $region36: #{tpu_custom_call.1} parent=1 // pred_region
      %88 = dma.done [#allocation6], 3200
    $region37: #{tpu_custom_call.1} parent=1 // pred_fallthru
      _
    // Predicated region
    $region38: #{tpu_custom_call.1} parent=1 // pred_check
      _
    $region39: #{tpu_custom_call.1} parent=1 // pred_check_branch
      %90 = sbr.rel (0) target = $region41
    $region40: #{tpu_custom_call.1} parent=1 // pred_region
      %92 = dma.done [#allocation6], 32
    $region41: #{tpu_custom_call.1} parent=1 // pred_fallthru
      _
    // Predicated region
    $region42: #{tpu_custom_call.1} parent=1 // pred_check
      _
    $region43: #{tpu_custom_call.1} parent=1 // pred_check_branch
      %94 = sbr.rel (0) target = $region45
    $region44: #{tpu_custom_call.1} parent=1 // pred_region
      %96 = dma.done [#allocation9], 4096
    $region45: #{tpu_custom_call.1} parent=1 // pred_fallthru
      _
    // Predicated region
    $region46: #{tpu_custom_call.1} parent=1 // pred_check
      _
    $region47: #{tpu_custom_call.1} parent=1 // pred_check_branch
      %98 = sbr.rel (0) target = $region49
    $region48: #{tpu_custom_call.1} parent=1 // pred_region
      %100 = dma.done [#allocation9], 2048
    $region49: #{tpu_custom_call.1} parent=1 // pred_fallthru
      _
    %v102 = vld [vmem:[#allocation2] sm:$0xff]
    %v103 = vld [vmem:[#allocation2 + $0x8] sm:$0xff]
    %v104 = vpack.c.bf16 %v102, %v102
    %v105 = vpack.c.bf16 %v103, %v103
    %v106 = vld [vmem:[#allocation5] sm:$0xff]
    %v107 = vld [vmem:[#allocation5 + $0x8] sm:$0xff]
    %v108 = vld [vmem:[#allocation5 + $0x10] sm:$0xff]
    %v109 = vld [vmem:[#allocation5 + $0x18] sm:$0xff]
    %v110 = vld [vmem:[#allocation5 + $0x20] sm:$0xff]
    %v111 = vld [vmem:[#allocation5 + $0x28] sm:$0xff]
    %v112 = vld [vmem:[#allocation5 + $0x30] sm:$0xff]
    %v113 = vld [vmem:[#allocation5 + $0x38] sm:$0xff]
    %v114 = vld [vmem:[#allocation5 + $0x40] sm:$0xff]
    %v115 = vld [vmem:[#allocation5 + $0x48] sm:$0xff]
    %v116 = vld [vmem:[#allocation5 + $0x50] sm:$0xff]
    %v117 = vld [vmem:[#allocation5 + $0x58] sm:$0xff]
    %v118 = vld [vmem:[#allocation5 + $0x60] sm:$0xff]
    %v119 = vld [vmem:[#allocation5 + $0x68] sm:$0xff]
    %v120 = vld [vmem:[#allocation5 + $0x70] sm:$0xff]
    %v121 = vld [vmem:[#allocation5 + $0x78] sm:$0xff]
    %v122 = vld [vmem:[#allocation5 + $0x80] sm:$0xff]
    %v123 = vld [vmem:[#allocation5 + $0x88] sm:$0xff]
    %v124 = vld [vmem:[#allocation5 + $0x90] sm:$0xff]
    %v125 = vld [vmem:[#allocation5 + $0x98] sm:$0xff]
    %v126 = vld [vmem:[#allocation5 + $0xa0] sm:$0xff]
    %v127 = vld [vmem:[#allocation5 + $0xa8] sm:$0xff]
    %v128 = vld [vmem:[#allocation5 + $0xb0] sm:$0xff]
    %v129 = vld [vmem:[#allocation5 + $0xb8] sm:$0xff]
    %v130 = vld [vmem:[#allocation5 + $0xc0] sm:$0xff]
    %v131 = vld [vmem:[#allocation7] sm:$0x3]
    %v133 = vperm.slane %v131, 0
    %v134 = vperm.slane %v131, 1
    %v162 = vunpack.c.l.b16 %v106
    %v163 = vunpack.c.h.b16 %v106
    %v164 = vunpack.c.l.b16 %v107
    %v165 = vunpack.c.h.b16 %v107
    %v166 = vunpack.c.l.b16 %v108
    %v167 = vunpack.c.h.b16 %v108
    %v168 = vunpack.c.l.b16 %v109
    %v169 = vunpack.c.h.b16 %v109
    %v170 = vunpack.c.l.b16 %v110
    %v171 = vunpack.c.h.b16 %v110
    %v172 = vunpack.c.l.b16 %v111
    %v173 = vunpack.c.h.b16 %v111
    %v174 = vunpack.c.l.b16 %v112
    %v175 = vunpack.c.h.b16 %v112
    %v176 = vunpack.c.l.b16 %v113
    %v177 = vunpack.c.h.b16 %v113
    %v178 = vunpack.c.l.b16 %v114
    %v179 = vunpack.c.h.b16 %v114
    %v180 = vunpack.c.l.b16 %v115
    %v181 = vunpack.c.h.b16 %v115
    %v182 = vunpack.c.l.b16 %v116
    %v183 = vunpack.c.h.b16 %v116
    %v184 = vunpack.c.l.b16 %v117
    %v185 = vunpack.c.h.b16 %v117
    %v186 = vunpack.c.l.b16 %v118
    %v187 = vunpack.c.h.b16 %v118
    %v188 = vunpack.c.l.b16 %v119
    %v189 = vunpack.c.h.b16 %v119
    %v190 = vunpack.c.l.b16 %v120
    %v191 = vunpack.c.h.b16 %v120
    %v192 = vunpack.c.l.b16 %v121
    %v193 = vunpack.c.h.b16 %v121
    %v194 = vunpack.c.l.b16 %v122
    %v195 = vunpack.c.h.b16 %v122
    %v196 = vunpack.c.l.b16 %v123
    %v197 = vunpack.c.h.b16 %v123
    %v198 = vunpack.c.l.b16 %v124
    %v199 = vunpack.c.h.b16 %v124
    %v200 = vunpack.c.l.b16 %v125
    %v201 = vunpack.c.h.b16 %v125
    %v202 = vunpack.c.l.b16 %v126
    %v203 = vunpack.c.h.b16 %v126
    %v204 = vunpack.c.l.b16 %v127
    %v205 = vunpack.c.h.b16 %v127
    %v206 = vunpack.c.l.b16 %v128
    %v207 = vunpack.c.h.b16 %v128
    %v208 = vunpack.c.l.b16 %v129
    %v209 = vunpack.c.h.b16 %v129
    %v210 = vunpack.c.l.b16 %v130
    %v211 = vunpack.c.h.b16 %v130
    %v212 = vpack.c.b16 %v164, %v162
    %v213 = vpack.c.b16 %v165, %v163
    %v214 = vpack.c.b16 %v168, %v166
    %v215 = vpack.c.b16 %v169, %v167
    %v216 = vpack.c.b16 %v172, %v170
    %v217 = vpack.c.b16 %v173, %v171
    %v218 = vpack.c.b16 %v176, %v174
    %v219 = vpack.c.b16 %v177, %v175
    %v220 = vpack.c.b16 %v180, %v178
    %v221 = vpack.c.b16 %v181, %v179
    %v222 = vpack.c.b16 %v184, %v182
    %v223 = vpack.c.b16 %v185, %v183
    %v224 = vpack.c.b16 %v188, %v186
    %v225 = vpack.c.b16 %v189, %v187
    %v226 = vpack.c.b16 %v192, %v190
    %v227 = vpack.c.b16 %v193, %v191
    %v228 = vpack.c.b16 %v196, %v194
    %v229 = vpack.c.b16 %v197, %v195
    %v230 = vpack.c.b16 %v200, %v198
    %v231 = vpack.c.b16 %v201, %v199
    %v232 = vpack.c.b16 %v204, %v202
    %v233 = vpack.c.b16 %v205, %v203
    %v234 = vpack.c.b16 %v208, %v206
    %v235 = vpack.c.b16 %v209, %v207
    %v236 = vpack.c.b16 %v210, %v210
    %v237 = vpack.c.b16 %v211, %v211
    %vm262 = vcmask 588800
    %v264 = vsel %vm262, %v105, 0
    %vm266 = vcmask 1043456
    %v268 = vsel %vm266, %v236, 0
    %v271 = vsel %vm266, %v237, 0
    %273 = vmatpush.bf16.msra.mxu0 %v226
    %274 = vmatpush.bf16.msra.mxu0 %v224
    %275 = vmatpush.bf16.msra.mxu0 %v222
    %276 = vmatpush.bf16.msra.mxu0 %v220
    %277 = vmatpush.bf16.msra.mxu0 %v218
    %278 = vmatpush.bf16.msra.mxu0 %v216
    %279 = vmatpush.bf16.msra.mxu0 %v214
    %280 = vmatpush.bf16.msra.mxu0 %v212
    %281 = vmatmul.bf16.gmra.mxu0 %v104
    %v282 = vpop.f32.mrf.mxu0
    %v283 = vadd.f32 %v133, %v282
    %v284 = vpop.f32.mrf.mxu0
    %285 = vdwg.mxu0
    %286 = vmatpush.bf16.msra.mxu0 0
    %287 = vmatpush.bf16.msra.mxu0 0
    %288 = vmatpush.bf16.msra.mxu0 0
    %289 = vmatpush.bf16.msra.mxu0 %v268
    %290 = vmatpush.bf16.msra.mxu0 %v234
    %291 = vmatpush.bf16.msra.mxu0 %v232
    %292 = vmatpush.bf16.msra.mxu0 %v230
    %293 = vmatpush.bf16.msra.mxu0 %v228
    %294 = vmatmul.bf16.gmra.mxu0 %v264
    %v295 = vpop.f32.mrf.mxu0
    %v296 = vadd.f32 %v283, %v295
    %v297 = vpop.f32.mrf.mxu0
    %298 = vdwg.mxu0
    %299 = vmatpush.bf16.msra.mxu0 %v227
    %300 = vmatpush.bf16.msra.mxu0 %v225
    %301 = vmatpush.bf16.msra.mxu0 %v223
    %302 = vmatpush.bf16.msra.mxu0 %v221
    %303 = vmatpush.bf16.msra.mxu0 %v219
    %304 = vmatpush.bf16.msra.mxu0 %v217
    %305 = vmatpush.bf16.msra.mxu0 %v215
    %306 = vmatpush.bf16.msra.mxu0 %v213
    %307 = vmatmul.bf16.gmra.mxu0 %v104
    %v308 = vpop.f32.mrf.mxu0
    %v309 = vadd.f32 %v134, %v308
    %v310 = vpop.f32.mrf.mxu0
    %311 = vdwg.mxu0
    %312 = vmatpush.bf16.msra.mxu0 0
    %313 = vmatpush.bf16.msra.mxu0 0
    %314 = vmatpush.bf16.msra.mxu0 0
    %315 = vmatpush.bf16.msra.mxu0 %v271
    %316 = vmatpush.bf16.msra.mxu0 %v235
    %317 = vmatpush.bf16.msra.mxu0 %v233
    %318 = vmatpush.bf16.msra.mxu0 %v231
    %319 = vmatpush.bf16.msra.mxu0 %v229
    %320 = vmatmul.bf16.gmra.mxu0 %v264
    %v321 = vpop.f32.mrf.mxu0
    %v322 = vadd.f32 %v309, %v321
    %v323 = vpop.f32.mrf.mxu0
    %324 = vdwg.mxu0
    %v325 = vmax.f32 %v296, 0.0
    %v326 = vmax.f32 %v322, 0.0
    %v327 = vpack.c.bf16 %v325, %v325
    %v328 = vpack.c.bf16 %v326, %v326
    %v329 = vld [vmem:[#allocation8] sm:$0xff]
    %v330 = vld [vmem:[#allocation8 + $0x8] sm:$0xff]
    %v331 = vld [vmem:[#allocation8 + $0x10] sm:$0xff]
    %v332 = vld [vmem:[#allocation8 + $0x18] sm:$0xff]
    %v333 = vld [vmem:[#allocation8 + $0x20] sm:$0xff]
    %v334 = vld [vmem:[#allocation8 + $0x28] sm:$0xff]
    %v335 = vld [vmem:[#allocation8 + $0x30] sm:$0xff]
    %v336 = vld [vmem:[#allocation8 + $0x38] sm:$0xff]
    %v337 = vld [vmem:[#allocation8 + $0x40] sm:$0xff]
    %v338 = vld [vmem:[#allocation8 + $0x48] sm:$0xff]
    %v339 = vld [vmem:[#allocation8 + $0x50] sm:$0xff]
    %v340 = vld [vmem:[#allocation8 + $0x58] sm:$0xff]
    %v341 = vld [vmem:[#allocation8 + $0x60] sm:$0xff]
    %v342 = vld [vmem:[#allocation8 + $0x68] sm:$0xff]
    %v343 = vld [vmem:[#allocation8 + $0x70] sm:$0xff]
    %v344 = vld [vmem:[#allocation8 + $0x78] sm:$0xff]
    %v345 = vld [vmem:[#allocation8 + $0x80] sm:$0xff]
    %v346 = vld [vmem:[#allocation8 + $0x88] sm:$0xff]
    %v347 = vld [vmem:[#allocation8 + $0x90] sm:$0xff]
    %v348 = vld [vmem:[#allocation8 + $0x98] sm:$0xff]
    %v349 = vld [vmem:[#allocation8 + $0xa0] sm:$0xff]
    %v350 = vld [vmem:[#allocation8 + $0xa8] sm:$0xff]
    %v351 = vld [vmem:[#allocation8 + $0xb0] sm:$0xff]
    %v352 = vld [vmem:[#allocation8 + $0xb8] sm:$0xff]
    %v353 = vld [vmem:[#allocation8 + $0xc0] sm:$0xff]
    %v354 = vld [vmem:[#allocation8 + $0xc8] sm:$0xff]
    %v355 = vld [vmem:[#allocation8 + $0xd0] sm:$0xff]
    %v356 = vld [vmem:[#allocation8 + $0xd8] sm:$0xff]
    %v357 = vld [vmem:[#allocation8 + $0xe0] sm:$0xff]
    %v358 = vld [vmem:[#allocation8 + $0xe8] sm:$0xff]
    %v359 = vld [vmem:[#allocation8 + $0xf0] sm:$0xff]
    %v360 = vld [vmem:[#allocation8 + $0xf8] sm:$0xff]
    %v361 = vld [vmem:[%s4] sm:$0x3]
    %v363 = vperm.slane %v361, 0
    %v364 = vperm.slane %v361, 1
    %v399 = vunpack.c.l.b16 %v329
    %v400 = vunpack.c.h.b16 %v329
    %v401 = vunpack.c.l.b16 %v330
    %v402 = vunpack.c.h.b16 %v330
    %v403 = vunpack.c.l.b16 %v331
    %v404 = vunpack.c.h.b16 %v331
    %v405 = vunpack.c.l.b16 %v332
    %v406 = vunpack.c.h.b16 %v332
    %v407 = vunpack.c.l.b16 %v333
    %v408 = vunpack.c.h.b16 %v333
    %v409 = vunpack.c.l.b16 %v334
    %v410 = vunpack.c.h.b16 %v334
    %v411 = vunpack.c.l.b16 %v335
    %v412 = vunpack.c.h.b16 %v335
    %v413 = vunpack.c.l.b16 %v336
    %v414 = vunpack.c.h.b16 %v336
    %v415 = vunpack.c.l.b16 %v337
    %v416 = vunpack.c.h.b16 %v337
    %v417 = vunpack.c.l.b16 %v338
    %v418 = vunpack.c.h.b16 %v338
    %v419 = vunpack.c.l.b16 %v339
    %v420 = vunpack.c.h.b16 %v339
    %v421 = vunpack.c.l.b16 %v340
    %v422 = vunpack.c.h.b16 %v340
    %v423 = vunpack.c.l.b16 %v341
    %v424 = vunpack.c.h.b16 %v341
    %v425 = vunpack.c.l.b16 %v342
    %v426 = vunpack.c.h.b16 %v342
    %v427 = vunpack.c.l.b16 %v343
    %v428 = vunpack.c.h.b16 %v343
    %v429 = vunpack.c.l.b16 %v344
    %v430 = vunpack.c.h.b16 %v344
    %v431 = vunpack.c.l.b16 %v345
    %v432 = vunpack.c.h.b16 %v345
    %v433 = vunpack.c.l.b16 %v346
    %v434 = vunpack.c.h.b16 %v346
    %v435 = vunpack.c.l.b16 %v347
    %v436 = vunpack.c.h.b16 %v347
    %v437 = vunpack.c.l.b16 %v348
    %v438 = vunpack.c.h.b16 %v348
    %v439 = vunpack.c.l.b16 %v349
    %v440 = vunpack.c.h.b16 %v349
    %v441 = vunpack.c.l.b16 %v350
    %v442 = vunpack.c.h.b16 %v350
    %v443 = vunpack.c.l.b16 %v351
    %v444 = vunpack.c.h.b16 %v351
    %v445 = vunpack.c.l.b16 %v352
    %v446 = vunpack.c.h.b16 %v352
    %v447 = vunpack.c.l.b16 %v353
    %v448 = vunpack.c.h.b16 %v353
    %v449 = vunpack.c.l.b16 %v354
    %v450 = vunpack.c.h.b16 %v354
    %v451 = vunpack.c.l.b16 %v355
    %v452 = vunpack.c.h.b16 %v355
    %v453 = vunpack.c.l.b16 %v356
    %v454 = vunpack.c.h.b16 %v356
    %v455 = vunpack.c.l.b16 %v357
    %v456 = vunpack.c.h.b16 %v357
    %v457 = vunpack.c.l.b16 %v358
    %v458 = vunpack.c.h.b16 %v358
    %v459 = vunpack.c.l.b16 %v359
    %v460 = vunpack.c.h.b16 %v359
    %v461 = vunpack.c.l.b16 %v360
    %v462 = vunpack.c.h.b16 %v360
    %v463 = vpack.c.b16 %v401, %v399
    %v464 = vpack.c.b16 %v402, %v400
    %v465 = vpack.c.b16 %v405, %v403
    %v466 = vpack.c.b16 %v406, %v404
    %v467 = vpack.c.b16 %v409, %v407
    %v468 = vpack.c.b16 %v410, %v408
    %v469 = vpack.c.b16 %v413, %v411
    %v470 = vpack.c.b16 %v414, %v412
    %v471 = vpack.c.b16 %v417, %v415
    %v472 = vpack.c.b16 %v418, %v416
    %v473 = vpack.c.b16 %v421, %v419
    %v474 = vpack.c.b16 %v422, %v420
    %v475 = vpack.c.b16 %v425, %v423
    %v476 = vpack.c.b16 %v426, %v424
    %v477 = vpack.c.b16 %v429, %v427
    %v478 = vpack.c.b16 %v430, %v428
    %v479 = vpack.c.b16 %v433, %v431
    %v480 = vpack.c.b16 %v434, %v432
    %v481 = vpack.c.b16 %v437, %v435
    %v482 = vpack.c.b16 %v438, %v436
    %v483 = vpack.c.b16 %v441, %v439
    %v484 = vpack.c.b16 %v442, %v440
    %v485 = vpack.c.b16 %v445, %v443
    %v486 = vpack.c.b16 %v446, %v444
    %v487 = vpack.c.b16 %v449, %v447
    %v488 = vpack.c.b16 %v450, %v448
    %v489 = vpack.c.b16 %v453, %v451
    %v490 = vpack.c.b16 %v454, %v452
    %v491 = vpack.c.b16 %v457, %v455
    %v492 = vpack.c.b16 %v458, %v456
    %v493 = vpack.c.b16 %v461, %v459
    %v494 = vpack.c.b16 %v462, %v460
    %527 = vmatpush.bf16.msra.mxu0 %v477
    %528 = vmatpush.bf16.msra.mxu0 %v475
    %529 = vmatpush.bf16.msra.mxu0 %v473
    %530 = vmatpush.bf16.msra.mxu0 %v471
    %531 = vmatpush.bf16.msra.mxu0 %v469
    %532 = vmatpush.bf16.msra.mxu0 %v467
    %533 = vmatpush.bf16.msra.mxu0 %v465
    %534 = vmatpush.bf16.msra.mxu0 %v463
    %535 = vmatmul.bf16.gmra.mxu0 %v327
    %v536 = vpop.f32.mrf.mxu0
    %v537 = vadd.f32 %v363, %v536
    %v538 = vpop.f32.mrf.mxu0
    %539 = vdwg.mxu0
    %540 = vmatpush.bf16.msra.mxu0 %v493
    %541 = vmatpush.bf16.msra.mxu0 %v491
    %542 = vmatpush.bf16.msra.mxu0 %v489
    %543 = vmatpush.bf16.msra.mxu0 %v487
    %544 = vmatpush.bf16.msra.mxu0 %v485
    %545 = vmatpush.bf16.msra.mxu0 %v483
    %546 = vmatpush.bf16.msra.mxu0 %v481
    %547 = vmatpush.bf16.msra.mxu0 %v479
    %548 = vmatmul.bf16.gmra.mxu0 %v328
    %v549 = vpop.f32.mrf.mxu0
    %v550 = vadd.f32 %v537, %v549
    %v551 = vpop.f32.mrf.mxu0
    %552 = vdwg.mxu0
    %553 = vmatpush.bf16.msra.mxu0 %v478
    %554 = vmatpush.bf16.msra.mxu0 %v476
    %555 = vmatpush.bf16.msra.mxu0 %v474
    %556 = vmatpush.bf16.msra.mxu0 %v472
    %557 = vmatpush.bf16.msra.mxu0 %v470
    %558 = vmatpush.bf16.msra.mxu0 %v468
    %559 = vmatpush.bf16.msra.mxu0 %v466
    %560 = vmatpush.bf16.msra.mxu0 %v464
    %561 = vmatmul.bf16.gmra.mxu0 %v327
    %v562 = vpop.f32.mrf.mxu0
    %v563 = vadd.f32 %v364, %v562
    %v564 = vpop.f32.mrf.mxu0
    %565 = vdwg.mxu0
    %566 = vmatpush.bf16.msra.mxu0 %v494
    %567 = vmatpush.bf16.msra.mxu0 %v492
    %568 = vmatpush.bf16.msra.mxu0 %v490
    %569 = vmatpush.bf16.msra.mxu0 %v488
    %570 = vmatpush.bf16.msra.mxu0 %v486
    %571 = vmatpush.bf16.msra.mxu0 %v484
    %572 = vmatpush.bf16.msra.mxu0 %v482
    %573 = vmatpush.bf16.msra.mxu0 %v480
    %574 = vmatmul.bf16.gmra.mxu0 %v328
    %v575 = vpop.f32.mrf.mxu0
    %v576 = vadd.f32 %v563, %v575
    %v577 = vpop.f32.mrf.mxu0
    %578 = vdwg.mxu0
    %v579 = vmax.f32 %v550, 0.0
    %v580 = vmax.f32 %v576, 0.0
    %v581 = vpack.c.bf16 %v579, %v579
    %v582 = vpack.c.bf16 %v580, %v580
    %v583 = vld [vmem:[#allocation10] sm:$0xf]
    %v584 = vld [vmem:[#allocation10 + $0x4] sm:$0xf]
    %v585 = vld [vmem:[#allocation10 + $0x8] sm:$0xf]
    %v586 = vld [vmem:[#allocation10 + $0xc] sm:$0xf]
    %v587 = vld [vmem:[#allocation10 + $0x10] sm:$0xf]
    %v588 = vld [vmem:[#allocation10 + $0x14] sm:$0xf]
    %v589 = vld [vmem:[#allocation10 + $0x18] sm:$0xf]
    %v590 = vld [vmem:[#allocation10 + $0x1c] sm:$0xf]
    %v591 = vld [vmem:[#allocation10 + $0x20] sm:$0xf]
    %v592 = vld [vmem:[#allocation10 + $0x24] sm:$0xf]
    %v593 = vld [vmem:[#allocation10 + $0x28] sm:$0xf]
    %v594 = vld [vmem:[#allocation10 + $0x2c] sm:$0xf]
    %v595 = vld [vmem:[#allocation10 + $0x30] sm:$0xf]
    %v596 = vld [vmem:[#allocation10 + $0x34] sm:$0xf]
    %v597 = vld [vmem:[#allocation10 + $0x38] sm:$0xf]
    %v598 = vld [vmem:[#allocation10 + $0x3c] sm:$0xf]
    %v599 = vld [vmem:[#allocation10 + $0x40] sm:$0xf]
    %v600 = vld [vmem:[#allocation10 + $0x44] sm:$0xf]
    %v601 = vld [vmem:[#allocation10 + $0x48] sm:$0xf]
    %v602 = vld [vmem:[#allocation10 + $0x4c] sm:$0xf]
    %v603 = vld [vmem:[#allocation10 + $0x50] sm:$0xf]
    %v604 = vld [vmem:[#allocation10 + $0x54] sm:$0xf]
    %v605 = vld [vmem:[#allocation10 + $0x58] sm:$0xf]
    %v606 = vld [vmem:[#allocation10 + $0x5c] sm:$0xf]
    %v607 = vld [vmem:[#allocation10 + $0x60] sm:$0xf]
    %v608 = vld [vmem:[#allocation10 + $0x64] sm:$0xf]
    %v609 = vld [vmem:[#allocation10 + $0x68] sm:$0xf]
    %v610 = vld [vmem:[#allocation10 + $0x6c] sm:$0xf]
    %v611 = vld [vmem:[#allocation10 + $0x70] sm:$0xf]
    %v612 = vld [vmem:[#allocation10 + $0x74] sm:$0xf]
    %v613 = vld [vmem:[#allocation10 + $0x78] sm:$0xf]
    %v614 = vld [vmem:[#allocation10 + $0x7c] sm:$0xf]
    %v615 = vld [vmem:[%s6] sm:$0x1]
    %v617 = vperm.slane %v615, 0
    %v651 = vunpack.c.l.b16 %v583
    %v652 = vunpack.c.l.b16 %v584
    %v653 = vunpack.c.l.b16 %v585
    %v654 = vunpack.c.l.b16 %v586
    %v655 = vunpack.c.l.b16 %v587
    %v656 = vunpack.c.l.b16 %v588
    %v657 = vunpack.c.l.b16 %v589
    %v658 = vunpack.c.l.b16 %v590
    %v659 = vunpack.c.l.b16 %v591
    %v660 = vunpack.c.l.b16 %v592
    %v661 = vunpack.c.l.b16 %v593
    %v662 = vunpack.c.l.b16 %v594
    %v663 = vunpack.c.l.b16 %v595
    %v664 = vunpack.c.l.b16 %v596
    %v665 = vunpack.c.l.b16 %v597
    %v666 = vunpack.c.l.b16 %v598
    %v667 = vunpack.c.l.b16 %v599
    %v668 = vunpack.c.l.b16 %v600
    %v669 = vunpack.c.l.b16 %v601
    %v670 = vunpack.c.l.b16 %v602
    %v671 = vunpack.c.l.b16 %v603
    %v672 = vunpack.c.l.b16 %v604
    %v673 = vunpack.c.l.b16 %v605
    %v674 = vunpack.c.l.b16 %v606
    %v675 = vunpack.c.l.b16 %v607
    %v676 = vunpack.c.l.b16 %v608
    %v677 = vunpack.c.l.b16 %v609
    %v678 = vunpack.c.l.b16 %v610
    %v679 = vunpack.c.l.b16 %v611
    %v680 = vunpack.c.l.b16 %v612
    %v681 = vunpack.c.l.b16 %v613
    %v682 = vunpack.c.l.b16 %v614
    %v683 = vpack.c.b16 %v652, %v651
    %v684 = vpack.c.b16 %v654, %v653
    %v685 = vpack.c.b16 %v656, %v655
    %v686 = vpack.c.b16 %v658, %v657
    %v687 = vpack.c.b16 %v660, %v659
    %v688 = vpack.c.b16 %v662, %v661
    %v689 = vpack.c.b16 %v664, %v663
    %v690 = vpack.c.b16 %v666, %v665
    %v691 = vpack.c.b16 %v668, %v667
    %v692 = vpack.c.b16 %v670, %v669
    %v693 = vpack.c.b16 %v672, %v671
    %v694 = vpack.c.b16 %v674, %v673
    %v695 = vpack.c.b16 %v676, %v675
    %v696 = vpack.c.b16 %v678, %v677
    %v697 = vpack.c.b16 %v680, %v679
    %v698 = vpack.c.b16 %v682, %v681
    %715 = vmatpush.bf16.msra.mxu0 %v690
    %716 = vmatpush.bf16.msra.mxu0 %v689
    %717 = vmatpush.bf16.msra.mxu0 %v688
    %718 = vmatpush.bf16.msra.mxu0 %v687
    %719 = vmatpush.bf16.msra.mxu0 %v686
    %720 = vmatpush.bf16.msra.mxu0 %v685
    %721 = vmatpush.bf16.msra.mxu0 %v684
    %722 = vmatpush.bf16.msra.mxu0 %v683
    %723 = vmatmul.bf16.gmra.mxu0 %v581
    %v724 = vpop.f32.mrf.mxu0
    %v725 = vadd.f32 %v617, %v724
    %v726 = vpop.f32.mrf.mxu0
    %727 = vdwg.mxu0
    %728 = vmatpush.bf16.msra.mxu0 %v698
    %729 = vmatpush.bf16.msra.mxu0 %v697
    %730 = vmatpush.bf16.msra.mxu0 %v696
    %731 = vmatpush.bf16.msra.mxu0 %v695
    %732 = vmatpush.bf16.msra.mxu0 %v694
    %733 = vmatpush.bf16.msra.mxu0 %v693
    %734 = vmatpush.bf16.msra.mxu0 %v692
    %735 = vmatpush.bf16.msra.mxu0 %v691
    %736 = vmatmul.bf16.gmra.mxu0 %v582
    %v737 = vpop.f32.mrf.mxu0
    %v738 = vadd.f32 %v725, %v737
    %v739 = vpop.f32.mrf.mxu0
    %740 = vdwg.mxu0
    %741 = vst [vmem:[#allocation11] sm:$0xff] %v738
    // Predicated region
    $region50: #{tpu_custom_call.1} parent=1 // pred_check
      _
    $region51: #{tpu_custom_call.1} parent=1 // pred_check_branch
      %743 = sbr.rel (0) target = $region53
    $region52: #{tpu_custom_call.1} parent=1 // pred_region
      %745 = vsyncadd [#allocation4], 0
      %s747 = sshll.u32 [#allocation11], 4
      %s748 = int_to_ptr.vmem [resolvable:$true] %s747
      %s749 = sshll.u32 %s7, 4
      %s750 = int_to_ptr.hbm [resolvable:$true] %s749
      %752 = dma.vmem_to_hbm [thread:$0]  %s748, 128, %s750, [#allocation4]
    $region53: #{tpu_custom_call.1} parent=1 // pred_fallthru
      _
    // Predicated region
    $region54: #{tpu_custom_call.1} parent=1 // pred_check
      _
    $region55: #{tpu_custom_call.1} parent=1 // pred_check_branch
      %754 = sbr.rel (0) target = $region57
    $region56: #{tpu_custom_call.1} parent=1 // pred_region
      %756 = dma.done [#allocation4], 128
    $region57: #{tpu_custom_call.1} parent=1 // pred_fallthru
      _
    %757 = vsyncpa [#allocation3], 1
    %758 = vsyncpa [#allocation6], 1
    %759 = vsyncpa [#allocation9], 1
    %760 = vsyncpa [#allocation4], 1

</llo_original>
